<compile_context>
chip_gen: v7x
topology: tpu7x:2x2x1
jax: 0.10.0
libtpu: 0.0.40
codegen_flags: <defaults>
</compile_context>

<pallas_src>
import jax
import jax.numpy as jnp
from jax import lax
from jax.experimental import pallas as pl
from jax.experimental.pallas import tpu as pltpu

EPS = 1e-5
LANE = 128


# ---------------------------------------------------------------------------
# Kernel: pointwise (1x1) conv as matmul + folded-BN shift + ReLU
# ---------------------------------------------------------------------------
def _pw_bn_relu_kernel(x_ref, w_ref, shift_ref, o_ref):
    # (tm, Cin) @ (Cin, Cout) on the MXU, f32 accumulation.
    acc = jnp.dot(x_ref[...], w_ref[...], preferred_element_type=jnp.float32)
    acc = acc + shift_ref[...]          # BN scale already folded into w
    o_ref[...] = jnp.maximum(acc, 0.0).astype(o_ref.dtype)


def _round_up(v, m):
    return (v + m - 1) // m * m


def conv1x1_bn_relu(x_nchw, conv_w, conv_b, bn, *, eps=EPS, tm=1024,
                    use_bf16_mxu=True, lane_dense_pad=True):
    """ConvPac1_1.forward: 1x1 conv + BatchNorm (running stats) + ReLU.

    x_nchw : (N, Cin, H, W) float32 (PyTorch layout)
    conv_w : (Cout, Cin, 1, 1)   conv_b : (Cout,)
    bn     : (gamma, beta, running_mean, running_var), each (Cout,)
    returns: (N, Cout, H, W) float32
    """
    N, Cin, H, W = x_nchw.shape
    Cout = conv_w.shape[0]
    gamma, beta, mean, var = bn

    # ---- fold BN affine into the conv weight / bias (one-time, wrapper) ----
    scale = gamma * lax.rsqrt(var + eps)                        # (Cout,)
    w_folded = conv_w.reshape(Cout, Cin).T * scale[None, :]     # (Cin, Cout)
    shift = (conv_b - mean) * scale + beta                      # (Cout,)

    # ---- lane-dense output: pad Cout to a multiple of 128, slice after ----
    cout_p = _round_up(Cout, LANE) if lane_dense_pad else Cout
    if cout_p != Cout:
        w_folded = jnp.pad(w_folded, ((0, 0), (0, cout_p - Cout)))
        shift = jnp.pad(shift, (0, cout_p - Cout))

    # ---- NCHW -> (M, Cin) channels-last so channels map onto the lane axis --
    x2d = jnp.transpose(x_nchw, (0, 2, 3, 1)).reshape(N * H * W, Cin)

    if use_bf16_mxu:
        # bf16 MXU operands; accumulation and the BN shift stay in f32.
        x2d = x2d.astype(jnp.bfloat16)
        w_folded = w_folded.astype(jnp.bfloat16)

    M = N * H * W
    tm = min(tm, M)

    out = pl.pallas_call(
        _pw_bn_relu_kernel,
        out_shape=jax.ShapeDtypeStruct((M, cout_p), x_nchw.dtype),
        grid_spec=pltpu.PrefetchScalarGridSpec(
            num_scalar_prefetch=0,
            grid=(pl.cdiv(M, tm),),
            in_specs=[
                pl.BlockSpec((tm, Cin), lambda i: (i, 0)),
                pl.BlockSpec((Cin, cout_p), lambda i: (0, 0)),
                pl.BlockSpec((1, cout_p), lambda i: (0, 0)),
            ],
            out_specs=pl.BlockSpec((tm, cout_p), lambda i: (i, 0)),
        ),
        compiler_params=pltpu.CompilerParams(
            dimension_semantics=("parallel",),
        ),
    )(x2d, w_folded, shift.reshape(1, cout_p).astype(jnp.float32))

    out = out[:, :Cout]                       # drop lane padding (no-op if none)
    return jnp.transpose(out.reshape(N, H, W, Cout), (0, 3, 1, 2))


# ---------------------------------------------------------------------------
# Pure-JAX reference (f32, HIGHEST precision) for correctness checking
# ---------------------------------------------------------------------------
def conv1x1_bn_relu_reference(x, conv_w, conv_b, bn, eps=EPS):
    Cout, Cin = conv_w.shape[0], conv_w.shape[1]
    gamma, beta, mean, var = bn
    y = jnp.einsum("nchw,kc->nkhw", x, conv_w.reshape(Cout, Cin),
                   precision=lax.Precision.HIGHEST)
    y = y + conv_b[None, :, None, None]
    y = (y - mean[None, :, None, None]) \
        * (gamma * lax.rsqrt(var + eps))[None, :, None, None] \
        + beta[None, :, None, None]
    return jnp.maximum(y, 0.0)


# ---------------------------------------------------------------------------
# Deterministic parameter construction
# ---------------------------------------------------------------------------
def make_params(in_channels, out_channels, key):
    ks = iter(jax.random.split(key, 8))
    conv_w = jax.random.normal(next(ks), (out_channels, in_channels, 1, 1),
                               jnp.float32) * jnp.sqrt(2.0 / in_channels)
    conv_b = 0.01 * jax.random.normal(next(ks), (out_channels,), jnp.float32)
    gamma = 1.0 + 0.1 * jax.random.normal(next(ks), (out_channels,), jnp.float32)
    beta = 0.1 * jax.random.normal(next(ks), (out_channels,), jnp.float32)
    mean = 0.1 * jax.random.normal(next(ks), (out_channels,), jnp.float32)
    var = 1.0 + 0.1 * jnp.abs(jax.random.normal(next(ks), (out_channels,),
                                                jnp.float32))
    return conv_w, conv_b, (gamma, beta, mean, var)


if __name__ == "__main__":
    key = jax.random.PRNGKey(0)
    k_x, k_p = jax.random.split(key, 2)

    N, Cin, H, W = 2, 64, 16, 16
    Cout = 32

    x = jax.random.normal(k_x, (N, Cin, H, W), jnp.float32)
    conv_w, conv_b, bn = make_params(Cin, Cout, k_p)

    ref = jax.block_until_ready(conv1x1_bn_relu_reference(x, conv_w, conv_b, bn))

    # f32-operand path: tight-ish tolerance sanity check of the kernel itself.
    out_f32 = jax.block_until_ready(
        conv1x1_bn_relu(x, conv_w, conv_b, bn, use_bf16_mxu=False))
    if not jnp.allclose(out_f32, ref, rtol=1e-2, atol=1e-3):
        raise AssertionError(
            f"f32 path mismatch: max abs err {jnp.max(jnp.abs(out_f32 - ref))}")

    # bf16-MXU fast path (the one we'd use in production).
    out_bf16 = jax.block_until_ready(
        conv1x1_bn_relu(x, conv_w, conv_b, bn, use_bf16_mxu=True))
    if not jnp.allclose(out_bf16, ref, rtol=3e-2, atol=3e-2):
        raise AssertionError(
            f"bf16 path mismatch: max abs err {jnp.max(jnp.abs(out_bf16 - ref))}")

    print("KERNEL_OK")
</pallas_src>

<mosaic_0001>
module attributes {stable_mosaic.version = 11 : i64} {
  func.func @_pw_bn_relu_kernel(%arg0: i32, %arg1: memref<512x64xf32, #tpu.memory_space<vmem>>, %arg2: memref<64x128xf32, #tpu.memory_space<vmem>>, %arg3: memref<1x128xf32, #tpu.memory_space<vmem>>, %arg4: memref<512x128xf32, #tpu.memory_space<vmem>>) attributes {dimension_semantics = [#tpu.dimension_semantics<parallel>], iteration_bounds = array<i64: 1>, scalar_prefetch = 0 : i64, scratch_operands = 0 : i64, tpu.core_type = #tpu.core_type<tc>, window_params = [{transform_indices = @transform_0, window_bounds = array<i64: 512, 64>}, {pipeline_mode = #tpu.pipeline_mode<synchronous>, transform_indices = @transform_1, window_bounds = array<i64: 64, 128>}, {pipeline_mode = #tpu.pipeline_mode<synchronous>, transform_indices = @transform_2, window_bounds = array<i64: 1, 128>}, {transform_indices = @transform_3, window_bounds = array<i64: 512, 128>}]} {
    %c0 = arith.constant 0 : index
    %c0_0 = arith.constant 0 : index
    %0 = vector.load %arg1[%c0, %c0_0] : memref<512x64xf32, #tpu.memory_space<vmem>>, vector<512x64xf32>
    %c0_1 = arith.constant 0 : index
    %c0_2 = arith.constant 0 : index
    %1 = vector.load %arg2[%c0_1, %c0_2] : memref<64x128xf32, #tpu.memory_space<vmem>>, vector<64x128xf32>
    %cst = arith.constant dense<0.000000e+00> : vector<512x128xf32>
    %2 = tpu.matmul %0, %1, %cst {dimension_numbers = #tpu.dot_dimension_numbers<[1], [0], [0], [1], [0, 0, 1, 1], [], []>} : vector<512x64xf32>, vector<64x128xf32>, vector<512x128xf32> -> vector<512x128xf32>
    %c0_3 = arith.constant 0 : index
    %c0_4 = arith.constant 0 : index
    %3 = vector.load %arg3[%c0_3, %c0_4] : memref<1x128xf32, #tpu.memory_space<vmem>>, vector<1x128xf32>
    %4 = vector.broadcast %3 : vector<1x128xf32> to vector<512x128xf32>
    %5 = arith.addf %2, %4 : vector<512x128xf32>
    %cst_5 = arith.constant 0.000000e+00 : f32
    %6 = vector.broadcast %cst_5 : f32 to vector<512x128xf32>
    %7 = arith.maximumf %5, %6 : vector<512x128xf32>
    %c0_6 = arith.constant 0 : index
    %c0_7 = arith.constant 0 : index
    %8 = vector.load %arg4[%c0_6, %c0_7] : memref<512x128xf32, #tpu.memory_space<vmem>>, vector<512x128xf32>
    tpu.vector_store %arg4[%c0_6, %c0_7], %7 {strides = array<i32>} : memref<512x128xf32, #tpu.memory_space<vmem>>, vector<512x128xf32>,
    return
  }
  func.func @transform_0(%arg0: i32) -> (i32, i32) {
    %c0_i32 = arith.constant 0 : i32
    %c0_i32_0 = arith.constant 0 : i32
    return %arg0, %c0_i32 : i32, i32
  }
  func.func @transform_1(%arg0: i32) -> (i32, i32) {
    %c0_i32 = arith.constant 0 : i32
    %c0_i32_0 = arith.constant 0 : i32
    %c0_i32_1 = arith.constant 0 : i32
    return %c0_i32, %c0_i32_0 : i32, i32
  }
  func.func @transform_2(%arg0: i32) -> (i32, i32) {
    %c0_i32 = arith.constant 0 : i32
    %c0_i32_0 = arith.constant 0 : i32
    %c0_i32_1 = arith.constant 0 : i32
    return %c0_i32, %c0_i32_0 : i32, i32
  }
  func.func @transform_3(%arg0: i32) -> (i32, i32) {
    %c0_i32 = arith.constant 0 : i32
    %c0_i32_0 = arith.constant 0 : i32
    return %arg0, %c0_i32 : i32, i32
  }
}

</mosaic_0001>

<llo_original>
// kernel: tpu_custom_call.1
$region0: #{tpu_custom_call.1}
  #allocation0 [shape = 'u32[]', space=smem, size = 0x4, offset = 0x4, fixed_abs, tag = 'smem constant byte address 0x4 - core index']
  #allocation1 [shape = 'u32[144,128]{1,0:T(1,128)}', space=vmem, size = 0x12000, scoped, tag = 'internal scratch']
  %s0 = inlined_call_operand.vmem [shape: f32[512,64], index: 0, kind: input, shape index: {}]
  %s1 = inlined_call_operand.vmem [shape: f32[64,128], index: 1, kind: input, shape index: {}]
  %s2 = inlined_call_operand.vmem [shape: f32[1,128], index: 2, kind: input, shape index: {}]
  %s3 = inlined_call_operand.hbm [shape: f32[512,128], index: 3, kind: output, shape index: {}]
  %s4 = sld [smem:[#allocation0]]
  $region22: #{tpu_custom_call.1} parent=0
    _
  %s6 = ssub.s32 1, %s4
  %s7 = scalar_select 0, %s6, %s4
  $region1: #{tpu_custom_call.1} parent=0
    #allocation2 [shape = 'u8[262144]{0}', space=vmem, size = 0x40000, scoped, tag = 'output window, operand 0, single buffered']
    #allocation3 [shape = 's32[1]{0}', space=sflag, size = 0x4, scoped, tag = 'scoped memory for tpu_custom_call.1']
    %8 = vsyncpa [#allocation3], 0
    // Predicated region
    $region2: #{tpu_custom_call.1} parent=1 // pred_check
      _
    $region3: #{tpu_custom_call.1} parent=1 // pred_check_branch
      %10 = sbr.rel (0) target = $region5
    $region4: #{tpu_custom_call.1} parent=1 // pred_region
      _
    $region5: #{tpu_custom_call.1} parent=1 // pred_fallthru
      _
    // Predicated region
    $region6: #{tpu_custom_call.1} parent=1 // pred_check
      _
    $region7: #{tpu_custom_call.1} parent=1 // pred_check_branch
      %12 = sbr.rel (0) target = $region9
    $region8: #{tpu_custom_call.1} parent=1 // pred_region
      _
    $region9: #{tpu_custom_call.1} parent=1 // pred_fallthru
      _
    // Predicated region
    $region10: #{tpu_custom_call.1} parent=1 // pred_check
      _
    $region11: #{tpu_custom_call.1} parent=1 // pred_check_branch
      %14 = sbr.rel (0) target = $region13
    $region12: #{tpu_custom_call.1} parent=1 // pred_region
      _
    $region13: #{tpu_custom_call.1} parent=1 // pred_fallthru
      _
    %v15 = vld [vmem:[%s0] sm:$0xff]
    %v16 = vld [vmem:[%s0 + $0x8] sm:$0xff]
    %v17 = vld [vmem:[%s0 + $0x10] sm:$0xff]
    %v18 = vld [vmem:[%s0 + $0x18] sm:$0xff]
    %v19 = vld [vmem:[%s0 + $0x20] sm:$0xff]
    %v20 = vld [vmem:[%s0 + $0x28] sm:$0xff]
    %v21 = vld [vmem:[%s0 + $0x30] sm:$0xff]
    %v22 = vld [vmem:[%s0 + $0x38] sm:$0xff]
    %v23 = vld [vmem:[%s0 + $0x40] sm:$0xff]
    %v24 = vld [vmem:[%s0 + $0x48] sm:$0xff]
    %v25 = vld [vmem:[%s0 + $0x50] sm:$0xff]
    %v26 = vld [vmem:[%s0 + $0x58] sm:$0xff]
    %v27 = vld [vmem:[%s0 + $0x60] sm:$0xff]
    %v28 = vld [vmem:[%s0 + $0x68] sm:$0xff]
    %v29 = vld [vmem:[%s0 + $0x70] sm:$0xff]
    %v30 = vld [vmem:[%s0 + $0x78] sm:$0xff]
    %v31 = vld [vmem:[%s0 + $0x80] sm:$0xff]
    %v32 = vld [vmem:[%s0 + $0x88] sm:$0xff]
    %v33 = vld [vmem:[%s0 + $0x90] sm:$0xff]
    %v34 = vld [vmem:[%s0 + $0x98] sm:$0xff]
    %v35 = vld [vmem:[%s0 + $0xa0] sm:$0xff]
    %v36 = vld [vmem:[%s0 + $0xa8] sm:$0xff]
    %v37 = vld [vmem:[%s0 + $0xb0] sm:$0xff]
    %v38 = vld [vmem:[%s0 + $0xb8] sm:$0xff]
    %v39 = vld [vmem:[%s0 + $0xc0] sm:$0xff]
    %v40 = vld [vmem:[%s0 + $0xc8] sm:$0xff]
    %v41 = vld [vmem:[%s0 + $0xd0] sm:$0xff]
    %v42 = vld [vmem:[%s0 + $0xd8] sm:$0xff]
    %v43 = vld [vmem:[%s0 + $0xe0] sm:$0xff]
    %v44 = vld [vmem:[%s0 + $0xe8] sm:$0xff]
    %v45 = vld [vmem:[%s0 + $0xf0] sm:$0xff]
    %v46 = vld [vmem:[%s0 + $0xf8] sm:$0xff]
    %v47 = vld [vmem:[%s0 + $0x100] sm:$0xff]
    %v48 = vld [vmem:[%s0 + $0x108] sm:$0xff]
    %v49 = vld [vmem:[%s0 + $0x110] sm:$0xff]
    %v50 = vld [vmem:[%s0 + $0x118] sm:$0xff]
    %v51 = vld [vmem:[%s0 + $0x120] sm:$0xff]
    %v52 = vld [vmem:[%s0 + $0x128] sm:$0xff]
    %v53 = vld [vmem:[%s0 + $0x130] sm:$0xff]
    %v54 = vld [vmem:[%s0 + $0x138] sm:$0xff]
    %v55 = vld [vmem:[%s0 + $0x140] sm:$0xff]
    %v56 = vld [vmem:[%s0 + $0x148] sm:$0xff]
    %v57 = vld [vmem:[%s0 + $0x150] sm:$0xff]
    %v58 = vld [vmem:[%s0 + $0x158] sm:$0xff]
    %v59 = vld [vmem:[%s0 + $0x160] sm:$0xff]
    %v60 = vld [vmem:[%s0 + $0x168] sm:$0xff]
    %v61 = vld [vmem:[%s0 + $0x170] sm:$0xff]
    %v62 = vld [vmem:[%s0 + $0x178] sm:$0xff]
    %v63 = vld [vmem:[%s0 + $0x180] sm:$0xff]
    %v64 = vld [vmem:[%s0 + $0x188] sm:$0xff]
    %v65 = vld [vmem:[%s0 + $0x190] sm:$0xff]
    %v66 = vld [vmem:[%s0 + $0x198] sm:$0xff]
    %v67 = vld [vmem:[%s0 + $0x1a0] sm:$0xff]
    %v68 = vld [vmem:[%s0 + $0x1a8] sm:$0xff]
    %v69 = vld [vmem:[%s0 + $0x1b0] sm:$0xff]
    %v70 = vld [vmem:[%s0 + $0x1b8] sm:$0xff]
    %v71 = vld [vmem:[%s0 + $0x1c0] sm:$0xff]
    %v72 = vld [vmem:[%s0 + $0x1c8] sm:$0xff]
    %v73 = vld [vmem:[%s0 + $0x1d0] sm:$0xff]
    %v74 = vld [vmem:[%s0 + $0x1d8] sm:$0xff]
    %v75 = vld [vmem:[%s0 + $0x1e0] sm:$0xff]
    %v76 = vld [vmem:[%s0 + $0x1e8] sm:$0xff]
    %v77 = vld [vmem:[%s0 + $0x1f0] sm:$0xff]
    %v78 = vld [vmem:[%s0 + $0x1f8] sm:$0xff]
    %v79 = vld [vmem:[%s1] sm:$0xff]
    %v80 = vld [vmem:[%s1 + $0x8] sm:$0xff]
    %v81 = vld [vmem:[%s1 + $0x10] sm:$0xff]
    %v82 = vld [vmem:[%s1 + $0x18] sm:$0xff]
    %v83 = vld [vmem:[%s1 + $0x20] sm:$0xff]
    %v84 = vld [vmem:[%s1 + $0x28] sm:$0xff]
    %v85 = vld [vmem:[%s1 + $0x30] sm:$0xff]
    %v86 = vld [vmem:[%s1 + $0x38] sm:$0xff]
    %v87 = vld [vmem:[%s2] sm:$0x1]
    %v89 = vlaneseq
    %v90 = vshrl.u32 %v89, 7
    %v91 = vsub.s32 0, %v90
    %v92 = vrot.slane %v87, %v91
    %vm94 = vcmask 523264
    %v96 = vsel %vm94, %v15, 0
    %v99 = vsel %vm94, %v16, 0
    %v102 = vsel %vm94, %v17, 0
    %v105 = vsel %vm94, %v18, 0
    %v108 = vsel %vm94, %v19, 0
    %v111 = vsel %vm94, %v20, 0
    %v114 = vsel %vm94, %v21, 0
    %v117 = vsel %vm94, %v22, 0
    %v120 = vsel %vm94, %v23, 0
    %v123 = vsel %vm94, %v24, 0
    %v126 = vsel %vm94, %v25, 0
    %v129 = vsel %vm94, %v26, 0
    %v132 = vsel %vm94, %v27, 0
    %v135 = vsel %vm94, %v28, 0
    %v138 = vsel %vm94, %v29, 0
    %v141 = vsel %vm94, %v30, 0
    %v144 = vsel %vm94, %v31, 0
    %v147 = vsel %vm94, %v32, 0
    %v150 = vsel %vm94, %v33, 0
    %v153 = vsel %vm94, %v34, 0
    %v156 = vsel %vm94, %v35, 0
    %v159 = vsel %vm94, %v36, 0
    %v162 = vsel %vm94, %v37, 0
    %v165 = vsel %vm94, %v38, 0
    %v168 = vsel %vm94, %v39, 0
    %v171 = vsel %vm94, %v40, 0
    %v174 = vsel %vm94, %v41, 0
    %v177 = vsel %vm94, %v42, 0
    %v180 = vsel %vm94, %v43, 0
    %v183 = vsel %vm94, %v44, 0
    %v186 = vsel %vm94, %v45, 0
    %v189 = vsel %vm94, %v46, 0
    %v192 = vsel %vm94, %v47, 0
    %v195 = vsel %vm94, %v48, 0
    %v198 = vsel %vm94, %v49, 0
    %v201 = vsel %vm94, %v50, 0
    %v204 = vsel %vm94, %v51, 0
    %v207 = vsel %vm94, %v52, 0
    %v210 = vsel %vm94, %v53, 0
    %v213 = vsel %vm94, %v54, 0
    %v216 = vsel %vm94, %v55, 0
    %v219 = vsel %vm94, %v56, 0
    %v222 = vsel %vm94, %v57, 0
    %v225 = vsel %vm94, %v58, 0
    %v228 = vsel %vm94, %v59, 0
    %v231 = vsel %vm94, %v60, 0
    %v234 = vsel %vm94, %v61, 0
    %v237 = vsel %vm94, %v62, 0
    %v240 = vsel %vm94, %v63, 0
    %v243 = vsel %vm94, %v64, 0
    %v246 = vsel %vm94, %v65, 0
    %v249 = vsel %vm94, %v66, 0
    %v252 = vsel %vm94, %v67, 0
    %v255 = vsel %vm94, %v68, 0
    %v258 = vsel %vm94, %v69, 0
    %v261 = vsel %vm94, %v70, 0
    %v264 = vsel %vm94, %v71, 0
    %v267 = vsel %vm94, %v72, 0
    %v270 = vsel %vm94, %v73, 0
    %v273 = vsel %vm94, %v74, 0
    %v276 = vsel %vm94, %v75, 0
    %v279 = vsel %vm94, %v76, 0
    %v282 = vsel %vm94, %v77, 0
    %v285 = vsel %vm94, %v78, 0
    %287 = vmatprep.subr.mxu0 0.0
    %288 = vmatpush1.msra.mxu0 %v79
    %289 = vmatprep.subr.mxu0 0.0
    %290 = vmatpush1.msra.mxu0 %v80
    %291 = vmatprep.subr.mxu0 0.0
    %292 = vmatpush1.msra.mxu0 %v81
    %293 = vmatprep.subr.mxu0 0.0
    %294 = vmatpush1.msra.mxu0 %v82
    %295 = vmatprep.subr.mxu0 0.0
    %296 = vmatpush1.msra.mxu0 %v83
    %297 = vmatprep.subr.mxu0 0.0
    %298 = vmatpush1.msra.mxu0 %v84
    %299 = vmatprep.subr.mxu0 0.0
    %300 = vmatpush1.msra.mxu0 %v85
    %301 = vmatprep.subr.mxu0 0.0
    %302 = vmatpush1.msra.mxu0 %v86
    %303 = vmatprep.subr.mxu0 0.0
    %304 = vmatpush1.msra.mxu0 0.0
    %305 = vmatprep.subr.mxu0 0.0
    %306 = vmatpush1.msra.mxu0 0.0
    %307 = vmatprep.subr.mxu0 0.0
    %308 = vmatpush1.msra.mxu0 0.0
    %309 = vmatprep.subr.mxu0 0.0
    %310 = vmatpush1.msra.mxu0 0.0
    %311 = vmatprep.subr.mxu0 0.0
    %312 = vmatpush1.msra.mxu0 0.0
    %313 = vmatprep.subr.mxu0 0.0
    %314 = vmatpush1.msra.mxu0 0.0
    %315 = vmatprep.subr.mxu0 0.0
    %316 = vmatpush1.msra.mxu0 0.0
    %317 = vmatprep.subr.mxu0 0.0
    %318 = vmatpush1.msra.mxu0 0.0
    %319 = vmatprep.subr.mxu0 0.0
    %320 = vmatpush1.msra.mxu0 0.0
    %321 = vmatprep.subr.mxu0 0.0
    %322 = vmatpush1.msra.mxu0 0.0
    %323 = vmatprep.subr.mxu0 0.0
    %324 = vmatpush1.msra.mxu0 0.0
    %325 = vmatprep.subr.mxu0 0.0
    %326 = vmatpush1.msra.mxu0 0.0
    %327 = vmatprep.subr.mxu0 0.0
    %328 = vmatpush1.msra.mxu0 0.0
    %329 = vmatprep.subr.mxu0 0.0
    %330 = vmatpush1.msra.mxu0 0.0
    %331 = vmatprep.subr.mxu0 0.0
    %332 = vmatpush1.msra.mxu0 0.0
    %333 = vmatprep.subr.mxu0 0.0
    %334 = vmatpush1.msra.mxu0 0.0
    %335 = vmatprep.subr.mxu0 0.0
    %336 = vmatpush1.msra.mxu0 0.0
    %337 = vmatprep.subr.mxu0 0.0
    %338 = vmatpush1.msra.mxu0 0.0
    %339 = vmatprep.subr.mxu0 0.0
    %340 = vmatpush1.msra.mxu0 0.0
    %341 = vmatprep.subr.mxu0 0.0
    %342 = vmatpush1.msra.mxu0 0.0
    %343 = vmatprep.subr.mxu0 0.0
    %344 = vmatpush1.msra.mxu0 0.0
    %345 = vmatprep.subr.mxu0 0.0
    %346 = vmatpush1.msra.mxu0 0.0
    %347 = vmatprep.subr.mxu0 0.0
    %348 = vmatpush1.msra.mxu0 0.0
    %349 = vmatprep.subr.mxu0 0.0
    %350 = vmatpush1.msra.mxu0 0.0
    %351 = vmatprep.mubr.f32.mxu0 0.0
    %352 = vmatmul.mubr.f32.gmra.mrb[0].mxu0 %v96
    %v353 = vpop.f32.mrb[0].mxu0
    %v354 = vadd.f32 %v92, %v353
    %v355 = vpop.f32.mrb[0].mxu0
    %356 = vmatprep.mubr.f32.mxu0 0.0
    %357 = vmatmul.mubr.f32.gmra.mrb[0].mxu0 %v99
    %v358 = vpop.f32.mrb[0].mxu0
    %v359 = vadd.f32 %v92, %v358
    %v360 = vpop.f32.mrb[0].mxu0
    %361 = vmatprep.mubr.f32.mxu0 0.0
    %362 = vmatmul.mubr.f32.gmra.mrb[0].mxu0 %v102
    %v363 = vpop.f32.mrb[0].mxu0
    %v364 = vadd.f32 %v92, %v363
    %v365 = vpop.f32.mrb[0].mxu0
    %366 = vmatprep.mubr.f32.mxu0 0.0
    %367 = vmatmul.mubr.f32.gmra.mrb[0].mxu0 %v105
    %v368 = vpop.f32.mrb[0].mxu0
    %v369 = vadd.f32 %v92, %v368
    %v370 = vpop.f32.mrb[0].mxu0
    %371 = vmatprep.mubr.f32.mxu0 0.0
    %372 = vmatmul.mubr.f32.gmra.mrb[0].mxu0 %v108
    %v373 = vpop.f32.mrb[0].mxu0
    %v374 = vadd.f32 %v92, %v373
    %v375 = vpop.f32.mrb[0].mxu0
    %376 = vmatprep.mubr.f32.mxu0 0.0
    %377 = vmatmul.mubr.f32.gmra.mrb[0].mxu0 %v111
    %v378 = vpop.f32.mrb[0].mxu0
    %v379 = vadd.f32 %v92, %v378
    %v380 = vpop.f32.mrb[0].mxu0
    %381 = vmatprep.mubr.f32.mxu0 0.0
    %382 = vmatmul.mubr.f32.gmra.mrb[0].mxu0 %v114
    %v383 = vpop.f32.mrb[0].mxu0
    %v384 = vadd.f32 %v92, %v383
    %v385 = vpop.f32.mrb[0].mxu0
    %386 = vmatprep.mubr.f32.mxu0 0.0
    %387 = vmatmul.mubr.f32.gmra.mrb[0].mxu0 %v117
    %v388 = vpop.f32.mrb[0].mxu0
    %v389 = vadd.f32 %v92, %v388
    %v390 = vpop.f32.mrb[0].mxu0
    %391 = vmatprep.mubr.f32.mxu0 0.0
    %392 = vmatmul.mubr.f32.gmra.mrb[0].mxu0 %v120
    %v393 = vpop.f32.mrb[0].mxu0
    %v394 = vadd.f32 %v92, %v393
    %v395 = vpop.f32.mrb[0].mxu0
    %396 = vmatprep.mubr.f32.mxu0 0.0
    %397 = vmatmul.mubr.f32.gmra.mrb[0].mxu0 %v123
    %v398 = vpop.f32.mrb[0].mxu0
    %v399 = vadd.f32 %v92, %v398
    %v400 = vpop.f32.mrb[0].mxu0
    %401 = vmatprep.mubr.f32.mxu0 0.0
    %402 = vmatmul.mubr.f32.gmra.mrb[0].mxu0 %v126
    %v403 = vpop.f32.mrb[0].mxu0
    %v404 = vadd.f32 %v92, %v403
    %v405 = vpop.f32.mrb[0].mxu0
    %406 = vmatprep.mubr.f32.mxu0 0.0
    %407 = vmatmul.mubr.f32.gmra.mrb[0].mxu0 %v129
    %v408 = vpop.f32.mrb[0].mxu0
    %v409 = vadd.f32 %v92, %v408
    %v410 = vpop.f32.mrb[0].mxu0
    %411 = vmatprep.mubr.f32.mxu0 0.0
    %412 = vmatmul.mubr.f32.gmra.mrb[0].mxu0 %v132
    %v413 = vpop.f32.mrb[0].mxu0
    %v414 = vadd.f32 %v92, %v413
    %v415 = vpop.f32.mrb[0].mxu0
    %416 = vmatprep.mubr.f32.mxu0 0.0
    %417 = vmatmul.mubr.f32.gmra.mrb[0].mxu0 %v135
    %v418 = vpop.f32.mrb[0].mxu0
    %v419 = vadd.f32 %v92, %v418
    %v420 = vpop.f32.mrb[0].mxu0
    %421 = vmatprep.mubr.f32.mxu0 0.0
    %422 = vmatmul.mubr.f32.gmra.mrb[0].mxu0 %v138
    %v423 = vpop.f32.mrb[0].mxu0
    %v424 = vadd.f32 %v92, %v423
    %v425 = vpop.f32.mrb[0].mxu0
    %426 = vmatprep.mubr.f32.mxu0 0.0
    %427 = vmatmul.mubr.f32.gmra.mrb[0].mxu0 %v141
    %v428 = vpop.f32.mrb[0].mxu0
    %v429 = vadd.f32 %v92, %v428
    %v430 = vpop.f32.mrb[0].mxu0
    %431 = vmatprep.mubr.f32.mxu0 0.0
    %432 = vmatmul.mubr.f32.gmra.mrb[0].mxu0 %v144
    %v433 = vpop.f32.mrb[0].mxu0
    %v434 = vadd.f32 %v92, %v433
    %v435 = vpop.f32.mrb[0].mxu0
    %436 = vmatprep.mubr.f32.mxu0 0.0
    %437 = vmatmul.mubr.f32.gmra.mrb[0].mxu0 %v147
    %v438 = vpop.f32.mrb[0].mxu0
    %v439 = vadd.f32 %v92, %v438
    %v440 = vpop.f32.mrb[0].mxu0
    %441 = vmatprep.mubr.f32.mxu0 0.0
    %442 = vmatmul.mubr.f32.gmra.mrb[0].mxu0 %v150
    %v443 = vpop.f32.mrb[0].mxu0
    %v444 = vadd.f32 %v92, %v443
    %v445 = vpop.f32.mrb[0].mxu0
    %446 = vmatprep.mubr.f32.mxu0 0.0
    %447 = vmatmul.mubr.f32.gmra.mrb[0].mxu0 %v153
    %v448 = vpop.f32.mrb[0].mxu0
    %v449 = vadd.f32 %v92, %v448
    %v450 = vpop.f32.mrb[0].mxu0
    %451 = vmatprep.mubr.f32.mxu0 0.0
    %452 = vmatmul.mubr.f32.gmra.mrb[0].mxu0 %v156
    %v453 = vpop.f32.mrb[0].mxu0
    %v454 = vadd.f32 %v92, %v453
    %v455 = vpop.f32.mrb[0].mxu0
    %456 = vmatprep.mubr.f32.mxu0 0.0
    %457 = vmatmul.mubr.f32.gmra.mrb[0].mxu0 %v159
    %v458 = vpop.f32.mrb[0].mxu0
    %v459 = vadd.f32 %v92, %v458
    %v460 = vpop.f32.mrb[0].mxu0
    %461 = vmatprep.mubr.f32.mxu0 0.0
    %462 = vmatmul.mubr.f32.gmra.mrb[0].mxu0 %v162
    %v463 = vpop.f32.mrb[0].mxu0
    %v464 = vadd.f32 %v92, %v463
    %v465 = vpop.f32.mrb[0].mxu0
    %466 = vmatprep.mubr.f32.mxu0 0.0
    %467 = vmatmul.mubr.f32.gmra.mrb[0].mxu0 %v165
    %v468 = vpop.f32.mrb[0].mxu0
    %v469 = vadd.f32 %v92, %v468
    %v470 = vpop.f32.mrb[0].mxu0
    %471 = vmatprep.mubr.f32.mxu0 0.0
    %472 = vmatmul.mubr.f32.gmra.mrb[0].mxu0 %v168
    %v473 = vpop.f32.mrb[0].mxu0
    %v474 = vadd.f32 %v92, %v473
    %v475 = vpop.f32.mrb[0].mxu0
    %476 = vmatprep.mubr.f32.mxu0 0.0
    %477 = vmatmul.mubr.f32.gmra.mrb[0].mxu0 %v171
    %v478 = vpop.f32.mrb[0].mxu0
    %v479 = vadd.f32 %v92, %v478
    %v480 = vpop.f32.mrb[0].mxu0
    %481 = vmatprep.mubr.f32.mxu0 0.0
    %482 = vmatmul.mubr.f32.gmra.mrb[0].mxu0 %v174
    %v483 = vpop.f32.mrb[0].mxu0
    %v484 = vadd.f32 %v92, %v483
    %v485 = vpop.f32.mrb[0].mxu0
    %486 = vmatprep.mubr.f32.mxu0 0.0
    %487 = vmatmul.mubr.f32.gmra.mrb[0].mxu0 %v177
    %v488 = vpop.f32.mrb[0].mxu0
    %v489 = vadd.f32 %v92, %v488
    %v490 = vpop.f32.mrb[0].mxu0
    %491 = vmatprep.mubr.f32.mxu0 0.0
    %492 = vmatmul.mubr.f32.gmra.mrb[0].mxu0 %v180
    %v493 = vpop.f32.mrb[0].mxu0
    %v494 = vadd.f32 %v92, %v493
    %v495 = vpop.f32.mrb[0].mxu0
    %496 = vmatprep.mubr.f32.mxu0 0.0
    %497 = vmatmul.mubr.f32.gmra.mrb[0].mxu0 %v183
    %v498 = vpop.f32.mrb[0].mxu0
    %v499 = vadd.f32 %v92, %v498
    %v500 = vpop.f32.mrb[0].mxu0
    %501 = vmatprep.mubr.f32.mxu0 0.0
    %502 = vmatmul.mubr.f32.gmra.mrb[0].mxu0 %v186
    %v503 = vpop.f32.mrb[0].mxu0
    %v504 = vadd.f32 %v92, %v503
    %v505 = vpop.f32.mrb[0].mxu0
    %506 = vmatprep.mubr.f32.mxu0 0.0
    %507 = vmatmul.mubr.f32.gmra.mrb[0].mxu0 %v189
    %v508 = vpop.f32.mrb[0].mxu0
    %v509 = vadd.f32 %v92, %v508
    %v510 = vpop.f32.mrb[0].mxu0
    %511 = vmatprep.mubr.f32.mxu0 0.0
    %512 = vmatmul.mubr.f32.gmra.mrb[0].mxu0 %v192
    %v513 = vpop.f32.mrb[0].mxu0
    %v514 = vadd.f32 %v92, %v513
    %v515 = vpop.f32.mrb[0].mxu0
    %516 = vmatprep.mubr.f32.mxu0 0.0
    %517 = vmatmul.mubr.f32.gmra.mrb[0].mxu0 %v195
    %v518 = vpop.f32.mrb[0].mxu0
    %v519 = vadd.f32 %v92, %v518
    %v520 = vpop.f32.mrb[0].mxu0
    %521 = vmatprep.mubr.f32.mxu0 0.0
    %522 = vmatmul.mubr.f32.gmra.mrb[0].mxu0 %v198
    %v523 = vpop.f32.mrb[0].mxu0
    %v524 = vadd.f32 %v92, %v523
    %v525 = vpop.f32.mrb[0].mxu0
    %526 = vmatprep.mubr.f32.mxu0 0.0
    %527 = vmatmul.mubr.f32.gmra.mrb[0].mxu0 %v201
    %v528 = vpop.f32.mrb[0].mxu0
    %v529 = vadd.f32 %v92, %v528
    %v530 = vpop.f32.mrb[0].mxu0
    %531 = vmatprep.mubr.f32.mxu0 0.0
    %532 = vmatmul.mubr.f32.gmra.mrb[0].mxu0 %v204
    %v533 = vpop.f32.mrb[0].mxu0
    %v534 = vadd.f32 %v92, %v533
    %v535 = vpop.f32.mrb[0].mxu0
    %536 = vmatprep.mubr.f32.mxu0 0.0
    %537 = vmatmul.mubr.f32.gmra.mrb[0].mxu0 %v207
    %v538 = vpop.f32.mrb[0].mxu0
    %v539 = vadd.f32 %v92, %v538
    %v540 = vpop.f32.mrb[0].mxu0
    %541 = vmatprep.mubr.f32.mxu0 0.0
    %542 = vmatmul.mubr.f32.gmra.mrb[0].mxu0 %v210
    %v543 = vpop.f32.mrb[0].mxu0
    %v544 = vadd.f32 %v92, %v543
    %v545 = vpop.f32.mrb[0].mxu0
    %546 = vmatprep.mubr.f32.mxu0 0.0
    %547 = vmatmul.mubr.f32.gmra.mrb[0].mxu0 %v213
    %v548 = vpop.f32.mrb[0].mxu0
    %v549 = vadd.f32 %v92, %v548
    %v550 = vpop.f32.mrb[0].mxu0
    %551 = vmatprep.mubr.f32.mxu0 0.0
    %552 = vmatmul.mubr.f32.gmra.mrb[0].mxu0 %v216
    %v553 = vpop.f32.mrb[0].mxu0
    %v554 = vadd.f32 %v92, %v553
    %v555 = vpop.f32.mrb[0].mxu0
    %556 = vmatprep.mubr.f32.mxu0 0.0
    %557 = vmatmul.mubr.f32.gmra.mrb[0].mxu0 %v219
    %v558 = vpop.f32.mrb[0].mxu0
    %v559 = vadd.f32 %v92, %v558
    %v560 = vpop.f32.mrb[0].mxu0
    %561 = vmatprep.mubr.f32.mxu0 0.0
    %562 = vmatmul.mubr.f32.gmra.mrb[0].mxu0 %v222
    %v563 = vpop.f32.mrb[0].mxu0
    %v564 = vadd.f32 %v92, %v563
    %v565 = vpop.f32.mrb[0].mxu0
    %566 = vmatprep.mubr.f32.mxu0 0.0
    %567 = vmatmul.mubr.f32.gmra.mrb[0].mxu0 %v225
    %v568 = vpop.f32.mrb[0].mxu0
    %v569 = vadd.f32 %v92, %v568
    %v570 = vpop.f32.mrb[0].mxu0
    %571 = vmatprep.mubr.f32.mxu0 0.0
    %572 = vmatmul.mubr.f32.gmra.mrb[0].mxu0 %v228
    %v573 = vpop.f32.mrb[0].mxu0
    %v574 = vadd.f32 %v92, %v573
    %v575 = vpop.f32.mrb[0].mxu0
    %576 = vmatprep.mubr.f32.mxu0 0.0
    %577 = vmatmul.mubr.f32.gmra.mrb[0].mxu0 %v231
    %v578 = vpop.f32.mrb[0].mxu0
    %v579 = vadd.f32 %v92, %v578
    %v580 = vpop.f32.mrb[0].mxu0
    %581 = vmatprep.mubr.f32.mxu0 0.0
    %582 = vmatmul.mubr.f32.gmra.mrb[0].mxu0 %v234
    %v583 = vpop.f32.mrb[0].mxu0
    %v584 = vadd.f32 %v92, %v583
    %v585 = vpop.f32.mrb[0].mxu0
    %586 = vmatprep.mubr.f32.mxu0 0.0
    %587 = vmatmul.mubr.f32.gmra.mrb[0].mxu0 %v237
    %v588 = vpop.f32.mrb[0].mxu0
    %v589 = vadd.f32 %v92, %v588
    %v590 = vpop.f32.mrb[0].mxu0
    %591 = vmatprep.mubr.f32.mxu0 0.0
    %592 = vmatmul.mubr.f32.gmra.mrb[0].mxu0 %v240
    %v593 = vpop.f32.mrb[0].mxu0
    %v594 = vadd.f32 %v92, %v593
    %v595 = vpop.f32.mrb[0].mxu0
    %596 = vmatprep.mubr.f32.mxu0 0.0
    %597 = vmatmul.mubr.f32.gmra.mrb[0].mxu0 %v243
    %v598 = vpop.f32.mrb[0].mxu0
    %v599 = vadd.f32 %v92, %v598
    %v600 = vpop.f32.mrb[0].mxu0
    %601 = vmatprep.mubr.f32.mxu0 0.0
    %602 = vmatmul.mubr.f32.gmra.mrb[0].mxu0 %v246
    %v603 = vpop.f32.mrb[0].mxu0
    %v604 = vadd.f32 %v92, %v603
    %v605 = vpop.f32.mrb[0].mxu0
    %606 = vmatprep.mubr.f32.mxu0 0.0
    %607 = vmatmul.mubr.f32.gmra.mrb[0].mxu0 %v249
    %v608 = vpop.f32.mrb[0].mxu0
    %v609 = vadd.f32 %v92, %v608
    %v610 = vpop.f32.mrb[0].mxu0
    %611 = vmatprep.mubr.f32.mxu0 0.0
    %612 = vmatmul.mubr.f32.gmra.mrb[0].mxu0 %v252
    %v613 = vpop.f32.mrb[0].mxu0
    %v614 = vadd.f32 %v92, %v613
    %v615 = vpop.f32.mrb[0].mxu0
    %616 = vmatprep.mubr.f32.mxu0 0.0
    %617 = vmatmul.mubr.f32.gmra.mrb[0].mxu0 %v255
    %v618 = vpop.f32.mrb[0].mxu0
    %v619 = vadd.f32 %v92, %v618
    %v620 = vpop.f32.mrb[0].mxu0
    %621 = vmatprep.mubr.f32.mxu0 0.0
    %622 = vmatmul.mubr.f32.gmra.mrb[0].mxu0 %v258
    %v623 = vpop.f32.mrb[0].mxu0
    %v624 = vadd.f32 %v92, %v623
    %v625 = vpop.f32.mrb[0].mxu0
    %626 = vmatprep.mubr.f32.mxu0 0.0
    %627 = vmatmul.mubr.f32.gmra.mrb[0].mxu0 %v261
    %v628 = vpop.f32.mrb[0].mxu0
    %v629 = vadd.f32 %v92, %v628
    %v630 = vpop.f32.mrb[0].mxu0
    %631 = vmatprep.mubr.f32.mxu0 0.0
    %632 = vmatmul.mubr.f32.gmra.mrb[0].mxu0 %v264
    %v633 = vpop.f32.mrb[0].mxu0
    %v634 = vadd.f32 %v92, %v633
    %v635 = vpop.f32.mrb[0].mxu0
    %636 = vmatprep.mubr.f32.mxu0 0.0
    %637 = vmatmul.mubr.f32.gmra.mrb[0].mxu0 %v267
    %v638 = vpop.f32.mrb[0].mxu0
    %v639 = vadd.f32 %v92, %v638
    %v640 = vpop.f32.mrb[0].mxu0
    %641 = vmatprep.mubr.f32.mxu0 0.0
    %642 = vmatmul.mubr.f32.gmra.mrb[0].mxu0 %v270
    %v643 = vpop.f32.mrb[0].mxu0
    %v644 = vadd.f32 %v92, %v643
    %v645 = vpop.f32.mrb[0].mxu0
    %646 = vmatprep.mubr.f32.mxu0 0.0
    %647 = vmatmul.mubr.f32.gmra.mrb[0].mxu0 %v273
    %v648 = vpop.f32.mrb[0].mxu0
    %v649 = vadd.f32 %v92, %v648
    %v650 = vpop.f32.mrb[0].mxu0
    %651 = vmatprep.mubr.f32.mxu0 0.0
    %652 = vmatmul.mubr.f32.gmra.mrb[0].mxu0 %v276
    %v653 = vpop.f32.mrb[0].mxu0
    %v654 = vadd.f32 %v92, %v653
    %v655 = vpop.f32.mrb[0].mxu0
    %656 = vmatprep.mubr.f32.mxu0 0.0
    %657 = vmatmul.mubr.f32.gmra.mrb[0].mxu0 %v279
    %v658 = vpop.f32.mrb[0].mxu0
    %v659 = vadd.f32 %v92, %v658
    %v660 = vpop.f32.mrb[0].mxu0
    %661 = vmatprep.mubr.f32.mxu0 0.0
    %662 = vmatmul.mubr.f32.gmra.mrb[0].mxu0 %v282
    %v663 = vpop.f32.mrb[0].mxu0
    %v664 = vadd.f32 %v92, %v663
    %v665 = vpop.f32.mrb[0].mxu0
    %666 = vmatprep.mubr.f32.mxu0 0.0
    %667 = vmatmul.mubr.f32.gmra.mrb[0].mxu0 %v285
    %v668 = vpop.f32.mrb[0].mxu0
    %v669 = vadd.f32 %v92, %v668
    %v670 = vpop.f32.mrb[0].mxu0
    %671 = vdwg.mxu0
    %v672 = vmax.f32 %v354, 0.0
    %v673 = vmax.f32 %v359, 0.0
    %v674 = vmax.f32 %v364, 0.0
    %v675 = vmax.f32 %v369, 0.0
    %v676 = vmax.f32 %v374, 0.0
    %v677 = vmax.f32 %v379, 0.0
    %v678 = vmax.f32 %v384, 0.0
    %v679 = vmax.f32 %v389, 0.0
    %v680 = vmax.f32 %v394, 0.0
    %v681 = vmax.f32 %v399, 0.0
    %v682 = vmax.f32 %v404, 0.0
    %v683 = vmax.f32 %v409, 0.0
    %v684 = vmax.f32 %v414, 0.0
    %v685 = vmax.f32 %v419, 0.0
    %v686 = vmax.f32 %v424, 0.0
    %v687 = vmax.f32 %v429, 0.0
    %v688 = vmax.f32 %v434, 0.0
    %v689 = vmax.f32 %v439, 0.0
    %v690 = vmax.f32 %v444, 0.0
    %v691 = vmax.f32 %v449, 0.0
    %v692 = vmax.f32 %v454, 0.0
    %v693 = vmax.f32 %v459, 0.0
    %v694 = vmax.f32 %v464, 0.0
    %v695 = vmax.f32 %v469, 0.0
    %v696 = vmax.f32 %v474, 0.0
    %v697 = vmax.f32 %v479, 0.0
    %v698 = vmax.f32 %v484, 0.0
    %v699 = vmax.f32 %v489, 0.0
    %v700 = vmax.f32 %v494, 0.0
    %v701 = vmax.f32 %v499, 0.0
    %v702 = vmax.f32 %v504, 0.0
    %v703 = vmax.f32 %v509, 0.0
    %v704 = vmax.f32 %v514, 0.0
    %v705 = vmax.f32 %v519, 0.0
    %v706 = vmax.f32 %v524, 0.0
    %v707 = vmax.f32 %v529, 0.0
    %v708 = vmax.f32 %v534, 0.0
    %v709 = vmax.f32 %v539, 0.0
    %v710 = vmax.f32 %v544, 0.0
    %v711 = vmax.f32 %v549, 0.0
    %v712 = vmax.f32 %v554, 0.0
    %v713 = vmax.f32 %v559, 0.0
    %v714 = vmax.f32 %v564, 0.0
    %v715 = vmax.f32 %v569, 0.0
    %v716 = vmax.f32 %v574, 0.0
    %v717 = vmax.f32 %v579, 0.0
    %v718 = vmax.f32 %v584, 0.0
    %v719 = vmax.f32 %v589, 0.0
    %v720 = vmax.f32 %v594, 0.0
    %v721 = vmax.f32 %v599, 0.0
    %v722 = vmax.f32 %v604, 0.0
    %v723 = vmax.f32 %v609, 0.0
    %v724 = vmax.f32 %v614, 0.0
    %v725 = vmax.f32 %v619, 0.0
    %v726 = vmax.f32 %v624, 0.0
    %v727 = vmax.f32 %v629, 0.0
    %v728 = vmax.f32 %v634, 0.0
    %v729 = vmax.f32 %v639, 0.0
    %v730 = vmax.f32 %v644, 0.0
    %v731 = vmax.f32 %v649, 0.0
    %v732 = vmax.f32 %v654, 0.0
    %v733 = vmax.f32 %v659, 0.0
    %v734 = vmax.f32 %v664, 0.0
    %v735 = vmax.f32 %v669, 0.0
    %736 = vst [vmem:[#allocation2] sm:$0xff] %v672
    %737 = vst [vmem:[#allocation2 + $0x8] sm:$0xff] %v673
    %738 = vst [vmem:[#allocation2 + $0x10] sm:$0xff] %v674
    %739 = vst [vmem:[#allocation2 + $0x18] sm:$0xff] %v675
    %740 = vst [vmem:[#allocation2 + $0x20] sm:$0xff] %v676
    %741 = vst [vmem:[#allocation2 + $0x28] sm:$0xff] %v677
    %742 = vst [vmem:[#allocation2 + $0x30] sm:$0xff] %v678
    %743 = vst [vmem:[#allocation2 + $0x38] sm:$0xff] %v679
    %744 = vst [vmem:[#allocation2 + $0x40] sm:$0xff] %v680
    %745 = vst [vmem:[#allocation2 + $0x48] sm:$0xff] %v681
    %746 = vst [vmem:[#allocation2 + $0x50] sm:$0xff] %v682
    %747 = vst [vmem:[#allocation2 + $0x58] sm:$0xff] %v683
    %748 = vst [vmem:[#allocation2 + $0x60] sm:$0xff] %v684
    %749 = vst [vmem:[#allocation2 + $0x68] sm:$0xff] %v685
    %750 = vst [vmem:[#allocation2 + $0x70] sm:$0xff] %v686
    %751 = vst [vmem:[#allocation2 + $0x78] sm:$0xff] %v687
    %752 = vst [vmem:[#allocation2 + $0x80] sm:$0xff] %v688
    %753 = vst [vmem:[#allocation2 + $0x88] sm:$0xff] %v689
    %754 = vst [vmem:[#allocation2 + $0x90] sm:$0xff] %v690
    %755 = vst [vmem:[#allocation2 + $0x98] sm:$0xff] %v691
    %756 = vst [vmem:[#allocation2 + $0xa0] sm:$0xff] %v692
    %757 = vst [vmem:[#allocation2 + $0xa8] sm:$0xff] %v693
    %758 = vst [vmem:[#allocation2 + $0xb0] sm:$0xff] %v694
    %759 = vst [vmem:[#allocation2 + $0xb8] sm:$0xff] %v695
    %760 = vst [vmem:[#allocation2 + $0xc0] sm:$0xff] %v696
    %761 = vst [vmem:[#allocation2 + $0xc8] sm:$0xff] %v697
    %762 = vst [vmem:[#allocation2 + $0xd0] sm:$0xff] %v698
    %763 = vst [vmem:[#allocation2 + $0xd8] sm:$0xff] %v699
    %764 = vst [vmem:[#allocation2 + $0xe0] sm:$0xff] %v700
    %765 = vst [vmem:[#allocation2 + $0xe8] sm:$0xff] %v701
    %766 = vst [vmem:[#allocation2 + $0xf0] sm:$0xff] %v702
    %767 = vst [vmem:[#allocation2 + $0xf8] sm:$0xff] %v703
    %768 = vst [vmem:[#allocation2 + $0x100] sm:$0xff] %v704
    %769 = vst [vmem:[#allocation2 + $0x108] sm:$0xff] %v705
    %770 = vst [vmem:[#allocation2 + $0x110] sm:$0xff] %v706
    %771 = vst [vmem:[#allocation2 + $0x118] sm:$0xff] %v707
    %772 = vst [vmem:[#allocation2 + $0x120] sm:$0xff] %v708
    %773 = vst [vmem:[#allocation2 + $0x128] sm:$0xff] %v709
    %774 = vst [vmem:[#allocation2 + $0x130] sm:$0xff] %v710
    %775 = vst [vmem:[#allocation2 + $0x138] sm:$0xff] %v711
    %776 = vst [vmem:[#allocation2 + $0x140] sm:$0xff] %v712
    %777 = vst [vmem:[#allocation2 + $0x148] sm:$0xff] %v713
    %778 = vst [vmem:[#allocation2 + $0x150] sm:$0xff] %v714
    %779 = vst [vmem:[#allocation2 + $0x158] sm:$0xff] %v715
    %780 = vst [vmem:[#allocation2 + $0x160] sm:$0xff] %v716
    %781 = vst [vmem:[#allocation2 + $0x168] sm:$0xff] %v717
    %782 = vst [vmem:[#allocation2 + $0x170] sm:$0xff] %v718
    %783 = vst [vmem:[#allocation2 + $0x178] sm:$0xff] %v719
    %784 = vst [vmem:[#allocation2 + $0x180] sm:$0xff] %v720
    %785 = vst [vmem:[#allocation2 + $0x188] sm:$0xff] %v721
    %786 = vst [vmem:[#allocation2 + $0x190] sm:$0xff] %v722
    %787 = vst [vmem:[#allocation2 + $0x198] sm:$0xff] %v723
    %788 = vst [vmem:[#allocation2 + $0x1a0] sm:$0xff] %v724
    %789 = vst [vmem:[#allocation2 + $0x1a8] sm:$0xff] %v725
    %790 = vst [vmem:[#allocation2 + $0x1b0] sm:$0xff] %v726
    %791 = vst [vmem:[#allocation2 + $0x1b8] sm:$0xff] %v727
    %792 = vst [vmem:[#allocation2 + $0x1c0] sm:$0xff] %v728
    %793 = vst [vmem:[#allocation2 + $0x1c8] sm:$0xff] %v729
    %794 = vst [vmem:[#allocation2 + $0x1d0] sm:$0xff] %v730
    %795 = vst [vmem:[#allocation2 + $0x1d8] sm:$0xff] %v731
    %796 = vst [vmem:[#allocation2 + $0x1e0] sm:$0xff] %v732
    %797 = vst [vmem:[#allocation2 + $0x1e8] sm:$0xff] %v733
    %798 = vst [vmem:[#allocation2 + $0x1f0] sm:$0xff] %v734
    %799 = vst [vmem:[#allocation2 + $0x1f8] sm:$0xff] %v735
    // Predicated region
    $region14: #{tpu_custom_call.1} parent=1 // pred_check
      _
    $region15: #{tpu_custom_call.1} parent=1 // pred_check_branch
      %801 = sbr.rel (0) target = $region17
    $region16: #{tpu_custom_call.1} parent=1 // pred_region
      %s803 = ssub.s32 8192, 8192
      %804 = vsyncadd [#allocation3], %s803
      %s805 = sshll.u32 [#allocation2], 4
      %s806 = int_to_ptr.vmem [resolvable:$true] %s805
      %811 = dma.vmem_to_hbm [thread:$0]  %s806, 8192, %s3, [#allocation3], 128, 128, 8
    $region17: #{tpu_custom_call.1} parent=1 // pred_fallthru
      _
    // Predicated region
    $region18: #{tpu_custom_call.1} parent=1 // pred_check
      _
    $region19: #{tpu_custom_call.1} parent=1 // pred_check_branch
      %813 = sbr.rel (0) target = $region21
    $region20: #{tpu_custom_call.1} parent=1 // pred_region
      %814 = dma.done [#allocation3], 8192
    $region21: #{tpu_custom_call.1} parent=1 // pred_fallthru
      _
    %815 = vsyncpa [#allocation3], 1

</llo_original>
